<compile_context>
chip_gen: v5e
topology: v5e:2x2
jax: 0.10.0
libtpu: 0.0.40
codegen_flags: <defaults>
</compile_context>

<pallas_src>
import functools

import jax
import jax.numpy as jnp
from jax.experimental import pallas as pl
from jax.experimental.pallas import tpu as pltpu


def _round_up(x: int, m: int) -> int:
    return ((x + m - 1) // m) * m


def _cdiv(a: int, b: int) -> int:
    return -(-a // b)


def _mlp_fc_kernel(x_ref, w1_ref, b1_ref, w2_ref, b2_ref, o_ref):
    # In-kernel bf16 cast for the MXU; f32 accumulation and f32 epilogue.
    x = x_ref[...].astype(jnp.bfloat16)
    w1 = w1_ref[...].astype(jnp.bfloat16)
    w2 = w2_ref[...].astype(jnp.bfloat16)

    # h = tanh(x @ W1 + b1)
    h = jnp.dot(x, w1, preferred_element_type=jnp.float32)
    h = jnp.tanh(h + b1_ref[...])  # f32 bias + tanh (safe on v5e too)

    # y = h @ W2 + b2
    y = jnp.dot(h.astype(jnp.bfloat16), w2, preferred_element_type=jnp.float32)
    o_ref[...] = (y + b2_ref[...]).astype(o_ref.dtype)


@functools.partial(jax.jit, static_argnames=("batch_tile",))
def my_net_state_forward(obs, params, *, batch_tile: int = 2048):
    """Pallas equivalent of MyNetState.forward.

    obs:    (B, obs_dim) float32
    params: dict with w1 (obs_dim, hidden), b1 (1, hidden),
                      w2 (hidden, out_dim), b2 (1, out_dim)   (all float32)
    Returns (y2, others) where others == {} (matches the PyTorch module).
    """
    w1, b1, w2, b2 = params["w1"], params["b1"], params["w2"], params["b2"]
    B, obs_dim = obs.shape
    hidden = w1.shape[1]
    out_dim = w2.shape[1]

    # Batch tile: (8,·)-aligned, large enough to amortize per-step overhead,
    # but split into >= 2 grid steps when B allows so the "parallel" batch
    # axis actually uses both TensorCores on v7x.
    tb = batch_tile
    if B <= 2 * batch_tile:
        tb = _round_up(_cdiv(B, 2), 8)
    tb = max(8, min(tb, _round_up(B, 8)))

    grid = (_cdiv(B, tb),)

    cost = pl.CostEstimate(
        flops=2 * B * (obs_dim * hidden + hidden * out_dim),
        transcendentals=B * hidden,
        bytes_accessed=4 * (B * (obs_dim + out_dim)
                            + obs_dim * hidden + hidden
                            + hidden * out_dim + out_dim),
    )

    y2 = pl.pallas_call(
        _mlp_fc_kernel,
        out_shape=jax.ShapeDtypeStruct((B, out_dim), obs.dtype),
        grid_spec=pltpu.PrefetchScalarGridSpec(
            num_scalar_prefetch=0,
            grid=grid,
            in_specs=[
                # x: streamed per batch tile; last dim == full array dim, so
                # the (8,128) rule is satisfied without lane padding.
                pl.BlockSpec((tb, obs_dim), lambda i: (i, 0)),
                # weights / biases: full-array blocks, constant index_map ->
                # VMEM-resident across all grid steps.
                pl.BlockSpec((obs_dim, hidden), lambda i: (0, 0)),
                pl.BlockSpec((1, hidden), lambda i: (0, 0)),
                pl.BlockSpec((hidden, out_dim), lambda i: (0, 0)),
                pl.BlockSpec((1, out_dim), lambda i: (0, 0)),
            ],
            out_specs=pl.BlockSpec((tb, out_dim), lambda i: (i, 0)),
        ),
        compiler_params=pltpu.CompilerParams(
            dimension_semantics=("parallel",),   # megacore-shard the batch loop
            vmem_limit_bytes=32 * 1024 * 1024,   # portable to v7x's smaller VMEM
        ),
        cost_estimate=cost,
    )(obs, w1, b1, w2, b2)

    others = {}
    return y2, others


def init_params(key, obs_dim, hidden, out_dim):
    """Deterministic synthetic init (no checkpoint load)."""
    # TODO(synk): `fc` is an injected submodule in the original code; realized
    # here as Linear->Tanh->Linear with synthetic weights.
    k1, k2, k3, k4 = jax.random.split(key, 4)
    # PyTorch Linear weight is (out, in); keep it pre-transposed as (in, out).
    w1 = jax.random.normal(k1, (obs_dim, hidden), jnp.float32) * 0.1
    b1 = jax.random.normal(k2, (1, hidden), jnp.float32) * 0.01
    w2 = jax.random.normal(k3, (hidden, out_dim), jnp.float32) * 0.1
    b2 = jax.random.normal(k4, (1, out_dim), jnp.float32) * 0.01
    return {"w1": w1, "b1": b1, "w2": w2, "b2": b2}


def _reference_bf16(obs, params):
    """Reference that mirrors the kernel's numerics (bf16 matmuls, f32 acc)."""
    cd = jnp.bfloat16
    x = obs.astype(cd)
    w1 = params["w1"].astype(cd)
    w2 = params["w2"].astype(cd)
    h = jnp.dot(x, w1, preferred_element_type=jnp.float32) + params["b1"]
    h = jnp.tanh(h)
    y = jnp.dot(h.astype(cd), w2, preferred_element_type=jnp.float32)
    return y + params["b2"]


def _reference_f32(obs, params):
    h = jnp.tanh(obs @ params["w1"] + params["b1"])
    return h @ params["w2"] + params["b2"]


if __name__ == "__main__":
    key = jax.random.PRNGKey(0)
    B, obs_dim, hidden, out_dim = 8, 32, 64, 16

    k_obs, k_par, k_obs2 = jax.random.split(key, 3)
    obs = jax.random.normal(k_obs, (B, obs_dim), jnp.float32)
    params = init_params(k_par, obs_dim, hidden, out_dim)

    y2, others = my_net_state_forward(obs, params)
    y2 = jax.block_until_ready(y2)
    assert y2.shape == (B, out_dim)
    assert others == {}

    ref_bf16 = _reference_bf16(obs, params)
    ref_f32 = _reference_f32(obs, params)
    assert jnp.allclose(y2, ref_bf16, atol=1e-4, rtol=1e-4), \
        "mismatch vs bf16-matmul reference"
    assert jnp.allclose(y2, ref_f32, atol=2e-2, rtol=2e-2), \
        "mismatch vs f32 reference"

    # Second check: ragged batch (exercises >=2 grid steps + partial last tile).
    B2 = 100
    obs2 = jax.random.normal(k_obs2, (B2, obs_dim), jnp.float32)
    y2b, _ = my_net_state_forward(obs2, params)
    y2b = jax.block_until_ready(y2b)
    assert y2b.shape == (B2, out_dim)
    assert jnp.allclose(y2b, _reference_bf16(obs2, params), atol=1e-4, rtol=1e-4), \
        "mismatch vs bf16-matmul reference (ragged batch)"

    print("KERNEL_OK")
</pallas_src>

<mosaic_0001>
module attributes {stable_mosaic.version = 11 : i64} {
  func.func @_mlp_fc_kernel(%arg0: i32, %arg1: memref<8x32xf32, #tpu.memory_space<vmem>>, %arg2: memref<32x64xf32, #tpu.memory_space<vmem>>, %arg3: memref<1x64xf32, #tpu.memory_space<vmem>>, %arg4: memref<64x16xf32, #tpu.memory_space<vmem>>, %arg5: memref<1x16xf32, #tpu.memory_space<vmem>>, %arg6: memref<8x16xf32, #tpu.memory_space<vmem>>) attributes {dimension_semantics = [#tpu.dimension_semantics<parallel>], iteration_bounds = array<i64: 1>, scalar_prefetch = 0 : i64, scratch_operands = 0 : i64, tpu.core_type = #tpu.core_type<tc>, window_params = [{transform_indices = @transform_0, window_bounds = array<i64: 8, 32>}, {pipeline_mode = #tpu.pipeline_mode<synchronous>, transform_indices = @transform_1, window_bounds = array<i64: 32, 64>}, {pipeline_mode = #tpu.pipeline_mode<synchronous>, transform_indices = @transform_2, window_bounds = array<i64: 1, 64>}, {pipeline_mode = #tpu.pipeline_mode<synchronous>, transform_indices = @transform_3, window_bounds = array<i64: 64, 16>}, {pipeline_mode = #tpu.pipeline_mode<synchronous>, transform_indices = @transform_4, window_bounds = array<i64: 1, 16>}, {transform_indices = @transform_5, window_bounds = array<i64: 8, 16>}]} {
    %c0 = arith.constant 0 : index
    %c0_0 = arith.constant 0 : index
    %0 = vector.load %arg1[%c0, %c0_0] : memref<8x32xf32, #tpu.memory_space<vmem>>, vector<8x32xf32>
    %1 = arith.truncf %0 : vector<8x32xf32> to vector<8x32xbf16>
    %c0_1 = arith.constant 0 : index
    %c0_2 = arith.constant 0 : index
    %2 = vector.load %arg2[%c0_1, %c0_2] : memref<32x64xf32, #tpu.memory_space<vmem>>, vector<32x64xf32>
    %3 = arith.truncf %2 : vector<32x64xf32> to vector<32x64xbf16>
    %c0_3 = arith.constant 0 : index
    %c0_4 = arith.constant 0 : index
    %4 = vector.load %arg4[%c0_3, %c0_4] : memref<64x16xf32, #tpu.memory_space<vmem>>, vector<64x16xf32>
    %5 = arith.truncf %4 : vector<64x16xf32> to vector<64x16xbf16>
    %cst = arith.constant dense<0.000000e+00> : vector<8x64xf32>
    %6 = tpu.matmul %1, %3, %cst {dimension_numbers = #tpu.dot_dimension_numbers<[1], [0], [0], [1], [0, 0, 1, 1], [], []>} : vector<8x32xbf16>, vector<32x64xbf16>, vector<8x64xf32> -> vector<8x64xf32>
    %c0_5 = arith.constant 0 : index
    %c0_6 = arith.constant 0 : index
    %7 = vector.load %arg3[%c0_5, %c0_6] : memref<1x64xf32, #tpu.memory_space<vmem>>, vector<1x64xf32>
    %8 = vector.broadcast %7 : vector<1x64xf32> to vector<8x64xf32>
    %9 = arith.addf %6, %8 : vector<8x64xf32>
    %10 = math.tanh %9 : vector<8x64xf32>
    %11 = arith.truncf %10 : vector<8x64xf32> to vector<8x64xbf16>
    %cst_7 = arith.constant dense<0.000000e+00> : vector<8x16xf32>
    %12 = tpu.matmul %11, %5, %cst_7 {dimension_numbers = #tpu.dot_dimension_numbers<[1], [0], [0], [1], [0, 0, 1, 1], [], []>} : vector<8x64xbf16>, vector<64x16xbf16>, vector<8x16xf32> -> vector<8x16xf32>
    %c0_8 = arith.constant 0 : index
    %c0_9 = arith.constant 0 : index
    %13 = vector.load %arg5[%c0_8, %c0_9] : memref<1x16xf32, #tpu.memory_space<vmem>>, vector<1x16xf32>
    %14 = vector.broadcast %13 : vector<1x16xf32> to vector<8x16xf32>
    %15 = arith.addf %12, %14 : vector<8x16xf32>
    %c0_10 = arith.constant 0 : index
    %c0_11 = arith.constant 0 : index
    %16 = vector.load %arg6[%c0_10, %c0_11] : memref<8x16xf32, #tpu.memory_space<vmem>>, vector<8x16xf32>
    tpu.vector_store %arg6[%c0_10, %c0_11], %15 {strides = array<i32>} : memref<8x16xf32, #tpu.memory_space<vmem>>, vector<8x16xf32>,
    return
  }
  func.func @transform_0(%arg0: i32) -> (i32, i32) {
    %c0_i32 = arith.constant 0 : i32
    %c0_i32_0 = arith.constant 0 : i32
    return %arg0, %c0_i32 : i32, i32
  }
  func.func @transform_1(%arg0: i32) -> (i32, i32) {
    %c0_i32 = arith.constant 0 : i32
    %c0_i32_0 = arith.constant 0 : i32
    %c0_i32_1 = arith.constant 0 : i32
    return %c0_i32, %c0_i32_0 : i32, i32
  }
  func.func @transform_2(%arg0: i32) -> (i32, i32) {
    %c0_i32 = arith.constant 0 : i32
    %c0_i32_0 = arith.constant 0 : i32
    %c0_i32_1 = arith.constant 0 : i32
    return %c0_i32, %c0_i32_0 : i32, i32
  }
  func.func @transform_3(%arg0: i32) -> (i32, i32) {
    %c0_i32 = arith.constant 0 : i32
    %c0_i32_0 = arith.constant 0 : i32
    %c0_i32_1 = arith.constant 0 : i32
    return %c0_i32, %c0_i32_0 : i32, i32
  }
  func.func @transform_4(%arg0: i32) -> (i32, i32) {
    %c0_i32 = arith.constant 0 : i32
    %c0_i32_0 = arith.constant 0 : i32
    %c0_i32_1 = arith.constant 0 : i32
    return %c0_i32, %c0_i32_0 : i32, i32
  }
  func.func @transform_5(%arg0: i32) -> (i32, i32) {
    %c0_i32 = arith.constant 0 : i32
    %c0_i32_0 = arith.constant 0 : i32
    return %arg0, %c0_i32 : i32, i32
  }
}

</mosaic_0001>

<llo_original>
// kernel: my_net_state_forward.1
$region0: #{my_net_state_forward.1}
  #allocation0 [shape = 'u32[]', space=smem, size = 0x4, offset = 0x4, fixed_abs, tag = 'smem constant byte address 0x4 - core index']
  #allocation1 [shape = 'u32[72,128]{1,0:T(1,128)}', space=vmem, size = 0x9000, scoped, tag = 'internal scratch']
  %s0 = inlined_call_operand.vmem [shape: f32[8,32], index: 0, kind: input, shape index: {}]
  %s1 = inlined_call_operand.vmem [shape: f32[32,64], index: 1, kind: input, shape index: {}]
  %s2 = inlined_call_operand.vmem [shape: f32[1,64], index: 2, kind: input, shape index: {}]
  %s3 = inlined_call_operand.vmem [shape: f32[64,16], index: 3, kind: input, shape index: {}]
  %s4 = inlined_call_operand.vmem [shape: f32[1,16], index: 4, kind: input, shape index: {}]
  %s5 = inlined_call_operand.hbm [shape: f32[8,16], index: 5, kind: output, shape index: {}]
  %s6 = sld [smem:[#allocation0]]
  $region30: #{my_net_state_forward.1} parent=0
    _
  %s8 = ssub.s32 1, %s6
  %s9 = scalar_select 0, %s8, %s6
  $region1: #{my_net_state_forward.1} parent=0
    #allocation2 [shape = 'u8[4096]{0}', space=vmem, size = 0x1000, scoped, tag = 'output window, operand 0, single buffered']
    #allocation3 [shape = 's32[1]{0}', space=sflag, size = 0x4, scoped, tag = 'scoped memory for my_net_state_forward.1']
    %10 = vsyncpa [#allocation3], 0
    // Predicated region
    $region2: #{my_net_state_forward.1} parent=1 // pred_check
      _
    $region3: #{my_net_state_forward.1} parent=1 // pred_check_branch
      %12 = sbr.rel (0) target = $region5
    $region4: #{my_net_state_forward.1} parent=1 // pred_region
      _
    $region5: #{my_net_state_forward.1} parent=1 // pred_fallthru
      _
    // Predicated region
    $region6: #{my_net_state_forward.1} parent=1 // pred_check
      _
    $region7: #{my_net_state_forward.1} parent=1 // pred_check_branch
      %14 = sbr.rel (0) target = $region9
    $region8: #{my_net_state_forward.1} parent=1 // pred_region
      _
    $region9: #{my_net_state_forward.1} parent=1 // pred_fallthru
      _
    // Predicated region
    $region10: #{my_net_state_forward.1} parent=1 // pred_check
      _
    $region11: #{my_net_state_forward.1} parent=1 // pred_check_branch
      %16 = sbr.rel (0) target = $region13
    $region12: #{my_net_state_forward.1} parent=1 // pred_region
      _
    $region13: #{my_net_state_forward.1} parent=1 // pred_fallthru
      _
    // Predicated region
    $region14: #{my_net_state_forward.1} parent=1 // pred_check
      _
    $region15: #{my_net_state_forward.1} parent=1 // pred_check_branch
      %18 = sbr.rel (0) target = $region17
    $region16: #{my_net_state_forward.1} parent=1 // pred_region
      _
    $region17: #{my_net_state_forward.1} parent=1 // pred_fallthru
      _
    // Predicated region
    $region18: #{my_net_state_forward.1} parent=1 // pred_check
      _
    $region19: #{my_net_state_forward.1} parent=1 // pred_check_branch
      %20 = sbr.rel (0) target = $region21
    $region20: #{my_net_state_forward.1} parent=1 // pred_region
      _
    $region21: #{my_net_state_forward.1} parent=1 // pred_fallthru
      _
    %v22 = vld [vmem:[%s0] sm:$0xff]
    %v23 = vpack.c.bf16 %v22, %v22
    %v24 = vld [vmem:[%s1] sm:$0xff]
    %v25 = vld [vmem:[%s1 + $0x8] sm:$0xff]
    %v26 = vld [vmem:[%s1 + $0x10] sm:$0xff]
    %v27 = vld [vmem:[%s1 + $0x18] sm:$0xff]
    %v28 = vpack.c.bf16 %v25, %v24
    %v29 = vpack.c.bf16 %v27, %v26
    %v30 = vld [vmem:[%s3] sm:$0xff]
    %v31 = vld [vmem:[%s3 + $0x8] sm:$0xff]
    %v32 = vld [vmem:[%s3 + $0x10] sm:$0xff]
    %v33 = vld [vmem:[%s3 + $0x18] sm:$0xff]
    %v34 = vld [vmem:[%s3 + $0x20] sm:$0xff]
    %v35 = vld [vmem:[%s3 + $0x28] sm:$0xff]
    %v36 = vld [vmem:[%s3 + $0x30] sm:$0xff]
    %v37 = vld [vmem:[%s3 + $0x38] sm:$0xff]
    %v38 = vpack.c.bf16 %v31, %v30
    %v39 = vpack.c.bf16 %v33, %v32
    %v40 = vpack.c.bf16 %v35, %v34
    %v41 = vpack.c.bf16 %v37, %v36
    %v42 = vld [vmem:[%s2] sm:$0x1]
    %v44 = vperm.slane %v42, 0
    %vm46 = vcmask 261120
    %v48 = vsel %vm46, %v23, 0
    %50 = vmatpush.bf16.msra.mxu0 0
    %51 = vmatpush.bf16.msra.mxu0 0
    %52 = vmatpush.bf16.msra.mxu0 0
    %53 = vmatpush.bf16.msra.mxu0 0
    %54 = vmatpush.bf16.msra.mxu0 0
    %55 = vmatpush.bf16.msra.mxu0 0
    %56 = vmatpush.bf16.msra.mxu0 %v29
    %57 = vmatpush.bf16.msra.mxu0 %v28
    %58 = vmatmul.bf16.gmra.mxu0 %v48
    %v59 = vpop.f32.mrf.mxu0
    %v60 = vadd.f32 %v44, %v59
    %v61 = vpop.f32.mrf.mxu0
    %62 = vdwg.mxu0
    %v63 = vtanh.pop %v60
    %v64 = vpack.c.bf16 %v63, %v63
    %v65 = vld [vmem:[%s4] sm:$0x1]
    %v67 = vperm.slane %v65, 0
    %vm69 = vcmask 523264
    %v71 = vsel %vm69, %v64, 0
    %73 = vmatpush.bf16.msra.mxu0 0
    %74 = vmatpush.bf16.msra.mxu0 0
    %75 = vmatpush.bf16.msra.mxu0 0
    %76 = vmatpush.bf16.msra.mxu0 0
    %77 = vmatpush.bf16.msra.mxu0 %v41
    %78 = vmatpush.bf16.msra.mxu0 %v40
    %79 = vmatpush.bf16.msra.mxu0 %v39
    %80 = vmatpush.bf16.msra.mxu0 %v38
    %81 = vmatmul.bf16.gmra.mxu0 %v71
    %v82 = vpop.f32.mrf.mxu0
    %v83 = vadd.f32 %v67, %v82
    %v84 = vpop.f32.mrf.mxu0
    %85 = vdwg.mxu0
    %vm86 = vcmask 130048
    %87 = vst.msk [vmem:[#allocation2] sm:$0xff] %vm86, %v83
    // Predicated region
    $region22: #{my_net_state_forward.1} parent=1 // pred_check
      _
    $region23: #{my_net_state_forward.1} parent=1 // pred_check_branch
      %89 = sbr.rel (0) target = $region25
    $region24: #{my_net_state_forward.1} parent=1 // pred_region
      %91 = vsyncadd [#allocation3], 0
      %s93 = sshll.u32 [#allocation2], 4
      %s94 = int_to_ptr.vmem [resolvable:$true] %s93
      %s95 = sshll.u32 %s5, 4
      %s96 = int_to_ptr.hbm [resolvable:$true] %s95
      %98 = dma.vmem_to_hbm [thread:$0]  %s94, 128, %s96, [#allocation3]
    $region25: #{my_net_state_forward.1} parent=1 // pred_fallthru
      _
    // Predicated region
    $region26: #{my_net_state_forward.1} parent=1 // pred_check
      _
    $region27: #{my_net_state_forward.1} parent=1 // pred_check_branch
      %100 = sbr.rel (0) target = $region29
    $region28: #{my_net_state_forward.1} parent=1 // pred_region
      %102 = dma.done [#allocation3], 128
    $region29: #{my_net_state_forward.1} parent=1 // pred_fallthru
      _
    %103 = vsyncpa [#allocation3], 1

</llo_original>
